<compile_context>
chip_gen: v7x
topology: tpu7x:2x2x1
jax: 0.10.0
libtpu: 0.0.40
codegen_flags: <defaults>
</compile_context>

<pallas_src>
import jax
import jax.numpy as jnp
from jax import lax
from jax.experimental import pallas as pl
from jax.experimental.pallas import tpu as pltpu

SMOOTH = 1e-5


# ----------------------------------------------------------------------------- tiling


def _vmem_capacity_bytes():
    """Best-effort VMEM capacity query; conservative (64 MiB) fallback."""
    try:
        info = pltpu.get_tpu_info()
        cap = getattr(info, "vmem_capacity_bytes", None)
        if cap:
            return int(cap)
    except Exception:
        pass
    return 64 * 1024 * 1024


def _pick_tiling(P, C, p_chunk=None, sub_rows=None):
    """Choose (p_chunk, sub_rows) so the f32 working tile is ~target_bytes and
    each vreg's 8 sublanes are filled with pixel chunks.  Prefers a
    multiple-of-128 divisor of the lane-padded pixel count (zero-copy view);
    otherwise pads P and masks the tail in-kernel."""
    cap = _vmem_capacity_bytes()
    small_vmem = cap <= 64 * 1024 * 1024            # v7x-class part
    target_bytes = (4 << 20) if small_vmem else (6 << 20)
    vmem_limit = (40 << 20) if small_vmem else (64 << 20)
    SUB = 8                                         # f32 sublanes per vreg

    if p_chunk is None:
        tgt_pixels = max(SUB * 128, (target_bytes // (C * 4)) // 128 * 128)
        p_chunk_tgt = max(128, (tgt_pixels // SUB) // 128 * 128)
        p_lane = ((P + 127) // 128) * 128
        p_chunk_tgt = min(p_chunk_tgt, p_lane)
        best = 128
        d = 128
        while d <= p_chunk_tgt:                     # trace-time only, few hundred iters max
            if p_lane % d == 0:
                best = d
            d += 128
        if best >= max(128, p_chunk_tgt // 8):
            p_chunk = best                          # zero-copy view, no HBM pad pass
        else:
            p_chunk = p_chunk_tgt                   # accept one pad pass for a good tile

    P_pad = ((P + p_chunk - 1) // p_chunk) * p_chunk
    n_chunks = P_pad // p_chunk
    if sub_rows is None:
        sub_rows = min(SUB, n_chunks)
    sub_rows = min(sub_rows, n_chunks)
    n_tiles = (n_chunks + sub_rows - 1) // sub_rows
    return p_chunk, sub_rows, n_tiles, n_chunks, P_pad, vmem_limit


# ----------------------------------------------------------------------------- kernel


def _make_kernel(C, P, p_chunk, sub_rows, need_mask):
    def kernel(x_ref, t_ref, num_ref, den_ref):
        # x_ref  : (C, sub_rows, p_chunk)  logits (any float dtype, upcast here)
        # t_ref  : (1, sub_rows, p_chunk)  integer labels (narrow dtype ok)
        # num_ref: (C, sub_rows, 1) f32    per-class partial intersection
        # den_ref: (C, sub_rows, 1) f32    per-class partial (sum p + sum onehot)
        tgt = t_ref[0]                                           # (sub_rows, p_chunk)

        if need_mask:
            t_idx = pl.program_id(1)
            sub_i = lax.broadcasted_iota(jnp.int32, (sub_rows, p_chunk), 0)
            lane_i = lax.broadcasted_iota(jnp.int32, (sub_rows, p_chunk), 1)
            pix = (t_idx * sub_rows + sub_i) * p_chunk + lane_i  # global pixel index
            valid = pix < P
        else:
            valid = None

        # Per-class slices, each fully sublane-packed (sub_rows, p_chunk).
        xs = []
        for c in range(C):
            xc = x_ref[c].astype(jnp.float32)
            if valid is not None:
                xc = jnp.where(valid, xc, 0.0)       # keep exp() finite on pad/OOB data
            xs.append(xc)

        # Numerically stable softmax over the class axis: reduction over C is a
        # plain elementwise max/add of the C packed slices (VPU only).
        m = xs[0]
        for c in range(1, C):
            m = jnp.maximum(m, xs[c])
        es = [jnp.exp(xc - m) for xc in xs]
        z = es[0]
        for c in range(1, C):
            z = z + es[c]
        r = pl.reciprocal(z, approx=True)            # EUP vrcp, free bundle slot
        if valid is not None:
            r = jnp.where(valid, r, 0.0)             # zeroes p at padded/OOB pixels

        for c in range(C):
            p = es[c] * r
            ohb = tgt == c
            if valid is not None:
                ohb = jnp.logical_and(ohb, valid)
            oh = ohb.astype(jnp.float32)
            num_ref[c] = jnp.sum(p * oh, axis=1, keepdims=True)
            den_ref[c] = (jnp.sum(p, axis=1, keepdims=True) +
                          jnp.sum(oh, axis=1, keepdims=True))

    return kernel


# ----------------------------------------------------------------------------- wrapper


def ce_dice_loss(logits_nchw, target_nhw, alpha=0.5, num_classes=None,
                 weight=None, reduction="mean", p_chunk=None, sub_rows=None):
    """Matches CEDiceLoss.forward: returns dice_loss (the reference computes but
    discards ce_loss / combined_loss, so that path is dead code)."""
    del alpha, weight
    N, C, H, W = logits_nchw.shape
    if num_classes is None:
        num_classes = C
    assert num_classes == C, "num_classes must match the logits channel dim"
    P = H * W

    p_chunk, sub_rows, n_tiles, n_chunks, P_pad, vmem_limit = _pick_tiling(
        P, C, p_chunk=p_chunk, sub_rows=sub_rows)
    need_mask = (n_tiles * sub_rows * p_chunk) != P

    # Keep narrow integer labels as-is (less HBM traffic); widen only odd dtypes.
    if target_nhw.dtype.name not in ("int8", "int16", "int32"):
        target_nhw = target_nhw.astype(jnp.int32)

    x = logits_nchw.reshape(N, C, P)
    t = target_nhw.reshape(N, P)
    if P_pad != P:
        x = jnp.pad(x, ((0, 0), (0, 0), (0, P_pad - P)))
        t = jnp.pad(t, ((0, 0), (0, P_pad - P)))
    x4 = x.reshape(N, C, n_chunks, p_chunk)          # zero-copy views (no transpose)
    t4 = t.reshape(N, 1, n_chunks, p_chunk)

    kernel = _make_kernel(C, P, p_chunk, sub_rows, need_mask)
    out_rows = n_tiles * sub_rows

    num_out, den_out = pl.pallas_call(
        kernel,
        out_shape=(jax.ShapeDtypeStruct((N, C, out_rows, 1), jnp.float32),
                   jax.ShapeDtypeStruct((N, C, out_rows, 1), jnp.float32)),
        grid_spec=pltpu.PrefetchScalarGridSpec(
            num_scalar_prefetch=0,
            grid=(N, n_tiles),
            in_specs=[
                pl.BlockSpec((None, C, sub_rows, p_chunk), lambda b, i: (b, 0, i, 0)),
                pl.BlockSpec((None, 1, sub_rows, p_chunk), lambda b, i: (b, 0, i, 0)),
            ],
            out_specs=(
                pl.BlockSpec((None, C, sub_rows, 1), lambda b, i: (b, 0, i, 0)),
                pl.BlockSpec((None, C, sub_rows, 1), lambda b, i: (b, 0, i, 0)),
            ),
        ),
        compiler_params=pltpu.CompilerParams(
            dimension_semantics=("parallel", "parallel"),
            vmem_limit_bytes=vmem_limit,
        ),
    )(x4, t4)

    # Tiny finish on (N, C) arrays.
    num = jnp.sum(num_out.reshape(N, C, -1), axis=-1)
    den = jnp.sum(den_out.reshape(N, C, -1), axis=-1)
    dice = (2.0 * num + SMOOTH) / (den + SMOOTH)

    if reduction == "mean":
        return 1.0 - jnp.mean(dice)
    # 'sum' mirrors the reference exactly (num_classes - sum over all N*C dices)
    return jnp.float32(num_classes) - jnp.sum(dice)


# ----------------------------------------------------------------------------- reference


def _reference_dice_loss(logits, target, num_classes, reduction="mean"):
    N, C, H, W = logits.shape
    p = jax.nn.softmax(logits.astype(jnp.float32), axis=1).reshape(N, C, -1)
    oh = jnp.transpose(jax.nn.one_hot(target, C, dtype=jnp.float32),
                       (0, 3, 1, 2)).reshape(N, C, -1)
    inter = jnp.sum(p * oh, axis=2)
    dice = (2.0 * inter + SMOOTH) / (jnp.sum(p, axis=2) + jnp.sum(oh, axis=2) + SMOOTH)
    if reduction == "mean":
        return 1.0 - jnp.mean(dice)
    return jnp.float32(num_classes) - jnp.sum(dice)


if __name__ == "__main__":
    key = jax.random.PRNGKey(0)
    k1, k2, k3, k4 = jax.random.split(key, 4)

    # 1) f32 logits, int32 labels, fully automatic tiling (single tile per image)
    N, C, H, W = 2, 4, 16, 16
    logits = jax.random.normal(k1, (N, C, H, W), dtype=jnp.float32)
    target = jax.random.randint(k2, (N, H, W), 0, C, dtype=jnp.int32)
    loss = ce_dice_loss(logits, target, num_classes=C, reduction="mean")
    jax.block_until_ready(loss)
    ref = _reference_dice_loss(logits, target, C)
    assert jnp.allclose(loss, ref, rtol=0, atol=2e-3), (loss, ref)  # approx recip tolerance

    # 2) bf16 logits, int8 labels, forced small chunks -> multi-tile grid, 8 packed
    #    sublane rows per block, masked out-of-bounds rows on the last tile.
    N2, C2, H2, W2 = 2, 4, 48, 48
    logits2 = jax.random.normal(k3, (N2, C2, H2, W2), dtype=jnp.bfloat16)
    target2 = jax.random.randint(k4, (N2, H2, W2), 0, C2, dtype=jnp.int32).astype(jnp.int8)
    loss2 = ce_dice_loss(logits2, target2, num_classes=C2, reduction="mean", p_chunk=128)
    jax.block_until_ready(loss2)
    ref2 = _reference_dice_loss(logits2, target2, C2)
    assert jnp.allclose(loss2, ref2, rtol=0, atol=5e-3), (loss2, ref2)

    # 3) non-lane-aligned spatial size (pad + mask path), odd class count, 'sum' reduction
    N3, C3, H3, W3 = 1, 3, 10, 10
    logits3 = jax.random.normal(k1, (N3, C3, H3, W3), dtype=jnp.float32)
    target3 = jax.random.randint(k2, (N3, H3, W3), 0, C3, dtype=jnp.int32)
    loss3 = ce_dice_loss(logits3, target3, num_classes=C3, reduction="sum")
    jax.block_until_ready(loss3)
    ref3 = _reference_dice_loss(logits3, target3, C3, reduction="sum")
    assert jnp.allclose(loss3, ref3, rtol=0, atol=5e-3), (loss3, ref3)

    print("KERNEL_OK")
</pallas_src>

<mosaic_0001>
module attributes {stable_mosaic.version = 11 : i64} {
  func.func @kernel(%arg0: i32, %arg1: i32, %arg2: memref<1x4x1x256xf32, #tpu.memory_space<vmem>>, %arg3: memref<1x1x1x256xi32, #tpu.memory_space<vmem>>, %arg4: memref<1x4x1x1xf32, #tpu.memory_space<vmem>>, %arg5: memref<1x4x1x1xf32, #tpu.memory_space<vmem>>) attributes {dimension_semantics = [#tpu.dimension_semantics<parallel>, #tpu.dimension_semantics<parallel>], iteration_bounds = array<i64: 2, 1>, scalar_prefetch = 0 : i64, scratch_operands = 0 : i64, tpu.core_type = #tpu.core_type<tc>, window_params = [{transform_indices = @transform_0, window_bounds = array<i64: 1, 4, 1, 256>}, {transform_indices = @transform_1, window_bounds = array<i64: 1, 1, 1, 256>}, {transform_indices = @transform_2, window_bounds = array<i64: 1, 4, 1, 1>}, {transform_indices = @transform_3, window_bounds = array<i64: 1, 4, 1, 1>}]} {
    %c0 = arith.constant 0 : index
    %c0_0 = arith.constant 0 : index
    %c0_1 = arith.constant 0 : index
    %c0_2 = arith.constant 0 : index
    %0 = vector.load %arg3[%c0, %c0_0, %c0_1, %c0_2] : memref<1x1x1x256xi32, #tpu.memory_space<vmem>>, vector<1x1x1x256xi32>
    %1 = vector.shape_cast %0 : vector<1x1x1x256xi32> to vector<1x256xi32>
    %c0_3 = arith.constant 0 : index
    %c0_4 = arith.constant 0 : index
    %c0_5 = arith.constant 0 : index
    %c0_6 = arith.constant 0 : index
    %2 = vector.load %arg2[%c0_3, %c0_4, %c0_5, %c0_6] : memref<1x4x1x256xf32, #tpu.memory_space<vmem>>, vector<1x1x1x256xf32>
    %3 = vector.shape_cast %2 : vector<1x1x1x256xf32> to vector<1x256xf32>
    %c0_7 = arith.constant 0 : index
    %c1 = arith.constant 1 : index
    %c0_8 = arith.constant 0 : index
    %c0_9 = arith.constant 0 : index
    %4 = vector.load %arg2[%c0_7, %c1, %c0_8, %c0_9] : memref<1x4x1x256xf32, #tpu.memory_space<vmem>>, vector<1x1x1x256xf32>
    %5 = vector.shape_cast %4 : vector<1x1x1x256xf32> to vector<1x256xf32>
    %c0_10 = arith.constant 0 : index
    %c2 = arith.constant 2 : index
    %c0_11 = arith.constant 0 : index
    %c0_12 = arith.constant 0 : index
    %6 = vector.load %arg2[%c0_10, %c2, %c0_11, %c0_12] : memref<1x4x1x256xf32, #tpu.memory_space<vmem>>, vector<1x1x1x256xf32>
    %7 = vector.shape_cast %6 : vector<1x1x1x256xf32> to vector<1x256xf32>
    %c0_13 = arith.constant 0 : index
    %c3 = arith.constant 3 : index
    %c0_14 = arith.constant 0 : index
    %c0_15 = arith.constant 0 : index
    %8 = vector.load %arg2[%c0_13, %c3, %c0_14, %c0_15] : memref<1x4x1x256xf32, #tpu.memory_space<vmem>>, vector<1x1x1x256xf32>
    %9 = vector.shape_cast %8 : vector<1x1x1x256xf32> to vector<1x256xf32>
    %10 = arith.maximumf %3, %5 : vector<1x256xf32>
    %11 = arith.maximumf %10, %7 : vector<1x256xf32>
    %12 = arith.maximumf %11, %9 : vector<1x256xf32>
    %13 = arith.subf %3, %12 : vector<1x256xf32>
    %14 = math.exp %13 : vector<1x256xf32>
    %15 = arith.subf %5, %12 : vector<1x256xf32>
    %16 = math.exp %15 : vector<1x256xf32>
    %17 = arith.subf %7, %12 : vector<1x256xf32>
    %18 = math.exp %17 : vector<1x256xf32>
    %19 = arith.subf %9, %12 : vector<1x256xf32>
    %20 = math.exp %19 : vector<1x256xf32>
    %21 = arith.addf %14, %16 : vector<1x256xf32>
    %22 = arith.addf %21, %18 : vector<1x256xf32>
    %23 = arith.addf %22, %20 : vector<1x256xf32>
    %24 = tpu.reciprocal %23 {approx = true} : vector<1x256xf32> -> vector<1x256xf32>
    %25 = arith.mulf %14, %24 : vector<1x256xf32>
    %c0_i32 = arith.constant 0 : i32
    %26 = vector.broadcast %c0_i32 : i32 to vector<1x256xi32>
    %27 = arith.cmpi eq, %1, %26 : vector<1x256xi32>
    %28 = arith.extui %27 : vector<1x256xi1> to vector<1x256xi32>
    %29 = arith.sitofp %28 : vector<1x256xi32> to vector<1x256xf32>
    %30 = arith.mulf %25, %29 : vector<1x256xf32>
    %cst = arith.constant dense<0.000000e+00> : vector<1xf32>
    %31 = vector.multi_reduction <add>, %30, %cst [1] : vector<1x256xf32> to vector<1xf32>
    %32 = vector.shape_cast %31 : vector<1xf32> to vector<1x1xf32>
    %c0_16 = arith.constant 0 : index
    %c0_17 = arith.constant 0 : index
    %c0_18 = arith.constant 0 : index
    %c0_19 = arith.constant 0 : index
    %33 = vector.load %arg4[%c0_16, %c0_17, %c0_18, %c0_19] : memref<1x4x1x1xf32, #tpu.memory_space<vmem>>, vector<1x1x1x1xf32>
    %34 = vector.shape_cast %33 : vector<1x1x1x1xf32> to vector<1x1xf32>
    %35 = vector.shape_cast %32 : vector<1x1xf32> to vector<1x1x1x1xf32>
    tpu.vector_store %arg4[%c0_16, %c0_17, %c0_18, %c0_19], %35 {strides = array<i32>} : memref<1x4x1x1xf32, #tpu.memory_space<vmem>>, vector<1x1x1x1xf32>,
    %cst_20 = arith.constant dense<0.000000e+00> : vector<1xf32>
    %36 = vector.multi_reduction <add>, %25, %cst_20 [1] : vector<1x256xf32> to vector<1xf32>
    %37 = vector.shape_cast %36 : vector<1xf32> to vector<1x1xf32>
    %cst_21 = arith.constant dense<0.000000e+00> : vector<1xf32>
    %38 = vector.multi_reduction <add>, %29, %cst_21 [1] : vector<1x256xf32> to vector<1xf32>
    %39 = vector.shape_cast %38 : vector<1xf32> to vector<1x1xf32>
    %40 = arith.addf %37, %39 : vector<1x1xf32>
    %c0_22 = arith.constant 0 : index
    %c0_23 = arith.constant 0 : index
    %c0_24 = arith.constant 0 : index
    %c0_25 = arith.constant 0 : index
    %41 = vector.load %arg5[%c0_22, %c0_23, %c0_24, %c0_25] : memref<1x4x1x1xf32, #tpu.memory_space<vmem>>, vector<1x1x1x1xf32>
    %42 = vector.shape_cast %41 : vector<1x1x1x1xf32> to vector<1x1xf32>
    %43 = vector.shape_cast %40 : vector<1x1xf32> to vector<1x1x1x1xf32>
    tpu.vector_store %arg5[%c0_22, %c0_23, %c0_24, %c0_25], %43 {strides = array<i32>} : memref<1x4x1x1xf32, #tpu.memory_space<vmem>>, vector<1x1x1x1xf32>,
    %44 = arith.mulf %16, %24 : vector<1x256xf32>
    %c1_i32 = arith.constant 1 : i32
    %45 = vector.broadcast %c1_i32 : i32 to vector<1x256xi32>
    %46 = arith.cmpi eq, %1, %45 : vector<1x256xi32>
    %47 = arith.extui %46 : vector<1x256xi1> to vector<1x256xi32>
    %48 = arith.sitofp %47 : vector<1x256xi32> to vector<1x256xf32>
    %49 = arith.mulf %44, %48 : vector<1x256xf32>
    %cst_26 = arith.constant dense<0.000000e+00> : vector<1xf32>
    %50 = vector.multi_reduction <add>, %49, %cst_26 [1] : vector<1x256xf32> to vector<1xf32>
    %51 = vector.shape_cast %50 : vector<1xf32> to vector<1x1xf32>
    %c0_27 = arith.constant 0 : index
    %c1_28 = arith.constant 1 : index
    %c0_29 = arith.constant 0 : index
    %c0_30 = arith.constant 0 : index
    %52 = vector.load %arg4[%c0_27, %c1_28, %c0_29, %c0_30] : memref<1x4x1x1xf32, #tpu.memory_space<vmem>>, vector<1x1x1x1xf32>
    %53 = vector.shape_cast %52 : vector<1x1x1x1xf32> to vector<1x1xf32>
    %54 = vector.shape_cast %51 : vector<1x1xf32> to vector<1x1x1x1xf32>
    tpu.vector_store %arg4[%c0_27, %c1_28, %c0_29, %c0_30], %54 {strides = array<i32>} : memref<1x4x1x1xf32, #tpu.memory_space<vmem>>, vector<1x1x1x1xf32>,
    %cst_31 = arith.constant dense<0.000000e+00> : vector<1xf32>
    %55 = vector.multi_reduction <add>, %44, %cst_31 [1] : vector<1x256xf32> to vector<1xf32>
    %56 = vector.shape_cast %55 : vector<1xf32> to vector<1x1xf32>
    %cst_32 = arith.constant dense<0.000000e+00> : vector<1xf32>
    %57 = vector.multi_reduction <add>, %48, %cst_32 [1] : vector<1x256xf32> to vector<1xf32>
    %58 = vector.shape_cast %57 : vector<1xf32> to vector<1x1xf32>
    %59 = arith.addf %56, %58 : vector<1x1xf32>
    %c0_33 = arith.constant 0 : index
    %c1_34 = arith.constant 1 : index
    %c0_35 = arith.constant 0 : index
    %c0_36 = arith.constant 0 : index
    %60 = vector.load %arg5[%c0_33, %c1_34, %c0_35, %c0_36] : memref<1x4x1x1xf32, #tpu.memory_space<vmem>>, vector<1x1x1x1xf32>
    %61 = vector.shape_cast %60 : vector<1x1x1x1xf32> to vector<1x1xf32>
    %62 = vector.shape_cast %59 : vector<1x1xf32> to vector<1x1x1x1xf32>
    tpu.vector_store %arg5[%c0_33, %c1_34, %c0_35, %c0_36], %62 {strides = array<i32>} : memref<1x4x1x1xf32, #tpu.memory_space<vmem>>, vector<1x1x1x1xf32>,
    %63 = arith.mulf %18, %24 : vector<1x256xf32>
    %c2_i32 = arith.constant 2 : i32
    %64 = vector.broadcast %c2_i32 : i32 to vector<1x256xi32>
    %65 = arith.cmpi eq, %1, %64 : vector<1x256xi32>
    %66 = arith.extui %65 : vector<1x256xi1> to vector<1x256xi32>
    %67 = arith.sitofp %66 : vector<1x256xi32> to vector<1x256xf32>
    %68 = arith.mulf %63, %67 : vector<1x256xf32>
    %cst_37 = arith.constant dense<0.000000e+00> : vector<1xf32>
    %69 = vector.multi_reduction <add>, %68, %cst_37 [1] : vector<1x256xf32> to vector<1xf32>
    %70 = vector.shape_cast %69 : vector<1xf32> to vector<1x1xf32>
    %c0_38 = arith.constant 0 : index
    %c2_39 = arith.constant 2 : index
    %c0_40 = arith.constant 0 : index
    %c0_41 = arith.constant 0 : index
    %71 = vector.load %arg4[%c0_38, %c2_39, %c0_40, %c0_41] : memref<1x4x1x1xf32, #tpu.memory_space<vmem>>, vector<1x1x1x1xf32>
    %72 = vector.shape_cast %71 : vector<1x1x1x1xf32> to vector<1x1xf32>
    %73 = vector.shape_cast %70 : vector<1x1xf32> to vector<1x1x1x1xf32>
    tpu.vector_store %arg4[%c0_38, %c2_39, %c0_40, %c0_41], %73 {strides = array<i32>} : memref<1x4x1x1xf32, #tpu.memory_space<vmem>>, vector<1x1x1x1xf32>,
    %cst_42 = arith.constant dense<0.000000e+00> : vector<1xf32>
    %74 = vector.multi_reduction <add>, %63, %cst_42 [1] : vector<1x256xf32> to vector<1xf32>
    %75 = vector.shape_cast %74 : vector<1xf32> to vector<1x1xf32>
    %cst_43 = arith.constant dense<0.000000e+00> : vector<1xf32>
    %76 = vector.multi_reduction <add>, %67, %cst_43 [1] : vector<1x256xf32> to vector<1xf32>
    %77 = vector.shape_cast %76 : vector<1xf32> to vector<1x1xf32>
    %78 = arith.addf %75, %77 : vector<1x1xf32>
    %c0_44 = arith.constant 0 : index
    %c2_45 = arith.constant 2 : index
    %c0_46 = arith.constant 0 : index
    %c0_47 = arith.constant 0 : index
    %79 = vector.load %arg5[%c0_44, %c2_45, %c0_46, %c0_47] : memref<1x4x1x1xf32, #tpu.memory_space<vmem>>, vector<1x1x1x1xf32>
    %80 = vector.shape_cast %79 : vector<1x1x1x1xf32> to vector<1x1xf32>
    %81 = vector.shape_cast %78 : vector<1x1xf32> to vector<1x1x1x1xf32>
    tpu.vector_store %arg5[%c0_44, %c2_45, %c0_46, %c0_47], %81 {strides = array<i32>} : memref<1x4x1x1xf32, #tpu.memory_space<vmem>>, vector<1x1x1x1xf32>,
    %82 = arith.mulf %20, %24 : vector<1x256xf32>
    %c3_i32 = arith.constant 3 : i32
    %83 = vector.broadcast %c3_i32 : i32 to vector<1x256xi32>
    %84 = arith.cmpi eq, %1, %83 : vector<1x256xi32>
    %85 = arith.extui %84 : vector<1x256xi1> to vector<1x256xi32>
    %86 = arith.sitofp %85 : vector<1x256xi32> to vector<1x256xf32>
    %87 = arith.mulf %82, %86 : vector<1x256xf32>
    %cst_48 = arith.constant dense<0.000000e+00> : vector<1xf32>
    %88 = vector.multi_reduction <add>, %87, %cst_48 [1] : vector<1x256xf32> to vector<1xf32>
    %89 = vector.shape_cast %88 : vector<1xf32> to vector<1x1xf32>
    %c0_49 = arith.constant 0 : index
    %c3_50 = arith.constant 3 : index
    %c0_51 = arith.constant 0 : index
    %c0_52 = arith.constant 0 : index
    %90 = vector.load %arg4[%c0_49, %c3_50, %c0_51, %c0_52] : memref<1x4x1x1xf32, #tpu.memory_space<vmem>>, vector<1x1x1x1xf32>
    %91 = vector.shape_cast %90 : vector<1x1x1x1xf32> to vector<1x1xf32>
    %92 = vector.shape_cast %89 : vector<1x1xf32> to vector<1x1x1x1xf32>
    tpu.vector_store %arg4[%c0_49, %c3_50, %c0_51, %c0_52], %92 {strides = array<i32>} : memref<1x4x1x1xf32, #tpu.memory_space<vmem>>, vector<1x1x1x1xf32>,
    %cst_53 = arith.constant dense<0.000000e+00> : vector<1xf32>
    %93 = vector.multi_reduction <add>, %82, %cst_53 [1] : vector<1x256xf32> to vector<1xf32>
    %94 = vector.shape_cast %93 : vector<1xf32> to vector<1x1xf32>
    %cst_54 = arith.constant dense<0.000000e+00> : vector<1xf32>
    %95 = vector.multi_reduction <add>, %86, %cst_54 [1] : vector<1x256xf32> to vector<1xf32>
    %96 = vector.shape_cast %95 : vector<1xf32> to vector<1x1xf32>
    %97 = arith.addf %94, %96 : vector<1x1xf32>
    %c0_55 = arith.constant 0 : index
    %c3_56 = arith.constant 3 : index
    %c0_57 = arith.constant 0 : index
    %c0_58 = arith.constant 0 : index
    %98 = vector.load %arg5[%c0_55, %c3_56, %c0_57, %c0_58] : memref<1x4x1x1xf32, #tpu.memory_space<vmem>>, vector<1x1x1x1xf32>
    %99 = vector.shape_cast %98 : vector<1x1x1x1xf32> to vector<1x1xf32>
    %100 = vector.shape_cast %97 : vector<1x1xf32> to vector<1x1x1x1xf32>
    tpu.vector_store %arg5[%c0_55, %c3_56, %c0_57, %c0_58], %100 {strides = array<i32>} : memref<1x4x1x1xf32, #tpu.memory_space<vmem>>, vector<1x1x1x1xf32>,
    return
  }
  func.func @transform_0(%arg0: i32, %arg1: i32) -> (i32, i32, i32, i32) {
    %c0_i32 = arith.constant 0 : i32
    %c0_i32_0 = arith.constant 0 : i32
    %c0_i32_1 = arith.constant 0 : i32
    return %arg0, %c0_i32, %arg1, %c0_i32_0 : i32, i32, i32, i32
  }
  func.func @transform_1(%arg0: i32, %arg1: i32) -> (i32, i32, i32, i32) {
    %c0_i32 = arith.constant 0 : i32
    %c0_i32_0 = arith.constant 0 : i32
    %c0_i32_1 = arith.constant 0 : i32
    return %arg0, %c0_i32, %arg1, %c0_i32_0 : i32, i32, i32, i32
  }
  func.func @transform_2(%arg0: i32, %arg1: i32) -> (i32, i32, i32, i32) {
    %c0_i32 = arith.constant 0 : i32
    %c0_i32_0 = arith.constant 0 : i32
    %c0_i32_1 = arith.constant 0 : i32
    return %arg0, %c0_i32, %arg1, %c0_i32_0 : i32, i32, i32, i32
  }
  func.func @transform_3(%arg0: i32, %arg1: i32) -> (i32, i32, i32, i32) {
    %c0_i32 = arith.constant 0 : i32
    %c0_i32_0 = arith.constant 0 : i32
    %c0_i32_1 = arith.constant 0 : i32
    return %arg0, %c0_i32, %arg1, %c0_i32_0 : i32, i32, i32, i32
  }
}

</mosaic_0001>

<llo_original>
// kernel: tpu_custom_call.1
$region0: #{tpu_custom_call.1}
  #allocation0 [shape = 'u32[]', space=smem, size = 0x4, offset = 0x4, fixed_abs, tag = 'smem constant byte address 0x4 - core index']
  #allocation1 [shape = 'u32[144,128]{1,0:T(1,128)}', space=vmem, size = 0x12000, scoped, tag = 'internal scratch']
  %s0 = inlined_call_operand.hbm [shape: f32[2,4,1,256], index: 0, kind: input, shape index: {}]
  %s1 = inlined_call_operand.hbm [shape: s32[2,1,1,256], index: 1, kind: input, shape index: {}]
  %s2 = inlined_call_operand.vmem [shape: f32[2,4,1,1], index: 2, kind: output, shape index: {0}]
  %s3 = inlined_call_operand.vmem [shape: f32[2,4,1,1], index: 3, kind: output, shape index: {1}]
  %4 = xla_tuple %s2, %s3
  %s5 = sld [smem:[#allocation0]]
  $region57: #{tpu_custom_call.1} parent=0
    _
  %s7 = ssub.s32 1, %s5
  %s8 = scalar_select 0, %s7, %s5
  $region1: #{tpu_custom_call.1} parent=0
    #allocation2 [shape = 'u8[8192]{0}', space=vmem, size = 0x2000, scoped, tag = 'input window, operand 0']
    #allocation3 [shape = 's32[2]{0}', space=sflag, size = 0x8, scoped, tag = 'scoped memory for tpu_custom_call.1']
    #allocation4 [shape = 'u8[2048]{0}', space=vmem, size = 0x800, scoped, tag = 'input window, operand 1']
    #allocation5 [shape = 's32[2]{0}', space=sflag, size = 0x8, scoped, tag = 'scoped memory for tpu_custom_call.1']
    %9 = vsyncpa [#allocation3], 0
    %s10 = scalar_lea.sflag [#allocation3], 1
    %11 = vsyncpa %s10, 0
    %12 = vsyncpa [#allocation5], 0
    %s13 = scalar_lea.sflag [#allocation5], 1
    %14 = vsyncpa %s13, 0
    loop: start=0, step=1, limit=4
    $region2: #{tpu_custom_call.1} parent=1 // loop_pre_header
      _
    $region3: #{tpu_custom_call.1} parent=1 // loop_header
      %s16 = sphi 0, %s20
      %p17 = scmp.ge.s32.totalorder %s16, 4
      %s23 = sphi 0, %s35
      %s24 = sphi 0, %s31
      %s25 = sphi 0, %s23
      %s26 = sphi 0, %s24
      %s27 = sphi 0, %s25
      %s28 = sphi 0, %s26
      %s40 = sphi 0, %s42
      %s43 = sphi 0, %s40
      %s44 = sphi 0, %s43
      %s60 = sphi 0, %s44
      %s68 = sphi 0, %s70
      %s71 = sphi 0, %s68
      %s72 = sphi 0, %s71
      %s88 = sphi 0, %s72
      %s96 = sphi 0, %s98
      %s99 = sphi 0, %s96
      %s100 = sphi 0, %s99
      %s116 = sphi 0, %s100
      %s124 = sphi 0, %s126
      %s127 = sphi 0, %s124
      %s128 = sphi 0, %s127
      %s144 = sphi 0, %s128
    $region4: #{tpu_custom_call.1} parent=1 // loop_header_branch
      %19 = sbr.rel (%p17) target = $region8
    $region5: #{tpu_custom_call.1} parent=1 // loop_body
      %s21 = ssub.s32 %s16, 1
      %s22 = ssub.s32 %s16, 2
      %s29 = sadd.s32 1, %s24
      %p30 = scmp.ge.s32.totalorder %s29, 1
      %s31 = scalar_select %p30, 0, %s29
      %s32 = sadd.s32 1, %s23
      %s33 = scalar_select %p30, %s32, %s23
      %p34 = scmp.ge.s32.totalorder %s33, 2
      %s35 = scalar_select %p34, 0, %s33
      %s36 = ssub.s32 %s23, %s35
      %s37 = ssub.s32 %s24, %s31
      %s38 = sor.u32 %s36, %s37
      %p39 = scmp.eq.s32.totalorder %s38, 0
      %s41 = sadd.s32 %s40, 1
      %s42 = scalar_select %p39, %s40, %s41
      %p45 = pneg %p39
      %p46 = scmp.eq.s32.totalorder %s16, 1
      %p47 = por %p45, %p46
      %p48 = scmp.ne.s32.totalorder %s40, %s43
      %p49 = scmp.eq.s32.totalorder %s16, 0
      %p50 = por %p48, %p49
      %p51 = scmp.ne.s32.totalorder %s40, %s43
      %p52 = scmp.eq.s32.totalorder %s21, 1
      %p53 = por %p51, %p52
      %p54 = scmp.ne.s32.totalorder %s43, %s44
      %p55 = scmp.eq.s32.totalorder %s21, 0
      %p56 = por %p54, %p55
      %p57 = scmp.ne.s32.totalorder %s43, %s44
      %p58 = scmp.eq.s32.totalorder %s22, 1
      %p59 = por %p57, %p58
      %p61 = scmp.ne.s32.totalorder %s44, %s60
      %p62 = scmp.eq.s32.totalorder %s22, 0
      %p63 = por %p61, %p62
      %s64 = ssub.s32 %s23, %s35
      %s65 = ssub.s32 %s24, %s31
      %s66 = sor.u32 %s64, %s65
      %p67 = scmp.eq.s32.totalorder %s66, 0
      %s69 = sadd.s32 %s68, 1
      %s70 = scalar_select %p67, %s68, %s69
      %p73 = pneg %p67
      %p74 = scmp.eq.s32.totalorder %s16, 1
      %p75 = por %p73, %p74
      %p76 = scmp.ne.s32.totalorder %s68, %s71
      %p77 = scmp.eq.s32.totalorder %s16, 0
      %p78 = por %p76, %p77
      %p79 = scmp.ne.s32.totalorder %s68, %s71
      %p80 = scmp.eq.s32.totalorder %s21, 1
      %p81 = por %p79, %p80
      %p82 = scmp.ne.s32.totalorder %s71, %s72
      %p83 = scmp.eq.s32.totalorder %s21, 0
      %p84 = por %p82, %p83
      %p85 = scmp.ne.s32.totalorder %s71, %s72
      %p86 = scmp.eq.s32.totalorder %s22, 1
      %p87 = por %p85, %p86
      %p89 = scmp.ne.s32.totalorder %s72, %s88
      %p90 = scmp.eq.s32.totalorder %s22, 0
      %p91 = por %p89, %p90
      %s92 = ssub.s32 %s23, %s35
      %s93 = ssub.s32 %s24, %s31
      %s94 = sor.u32 %s92, %s93
      %p95 = scmp.eq.s32.totalorder %s94, 0
      %s97 = sadd.s32 %s96, 1
      %s98 = scalar_select %p95, %s96, %s97
      %p101 = pneg %p95
      %p102 = scmp.eq.s32.totalorder %s16, 1
      %p103 = por %p101, %p102
      %p104 = scmp.ne.s32.totalorder %s96, %s99
      %p105 = scmp.eq.s32.totalorder %s16, 0
      %p106 = por %p104, %p105
      %p107 = scmp.ne.s32.totalorder %s96, %s99
      %p108 = scmp.eq.s32.totalorder %s21, 1
      %p109 = por %p107, %p108
      %p110 = scmp.ne.s32.totalorder %s99, %s100
      %p111 = scmp.eq.s32.totalorder %s21, 0
      %p112 = por %p110, %p111
      %p113 = scmp.ne.s32.totalorder %s99, %s100
      %p114 = scmp.eq.s32.totalorder %s22, 1
      %p115 = por %p113, %p114
      %p117 = scmp.ne.s32.totalorder %s100, %s116
      %p118 = scmp.eq.s32.totalorder %s22, 0
      %p119 = por %p117, %p118
      %s120 = ssub.s32 %s23, %s35
      %s121 = ssub.s32 %s24, %s31
      %s122 = sor.u32 %s120, %s121
      %p123 = scmp.eq.s32.totalorder %s122, 0
      %s125 = sadd.s32 %s124, 1
      %s126 = scalar_select %p123, %s124, %s125
      %p129 = pneg %p123
      %p130 = scmp.eq.s32.totalorder %s16, 1
      %p131 = por %p129, %p130
      %p132 = scmp.ne.s32.totalorder %s124, %s127
      %p133 = scmp.eq.s32.totalorder %s16, 0
      %p134 = por %p132, %p133
      %p135 = scmp.ne.s32.totalorder %s124, %s127
      %p136 = scmp.eq.s32.totalorder %s21, 1
      %p137 = por %p135, %p136
      %p138 = scmp.ne.s32.totalorder %s127, %s128
      %p139 = scmp.eq.s32.totalorder %s21, 0
      %p140 = por %p138, %p139
      %p141 = scmp.ne.s32.totalorder %s127, %s128
      %p142 = scmp.eq.s32.totalorder %s22, 1
      %p143 = por %p141, %p142
      %p145 = scmp.ne.s32.totalorder %s128, %s144
      %p146 = scmp.eq.s32.totalorder %s22, 0
      %p147 = por %p145, %p146
      %p148 = scmp.le.s32.totalorder 1, %s16
      %p149 = scmp.lt.s32.totalorder %s16, 3
      %p150 = pnand %p148, %p149
      %p151 = pneg %p150
      // Predicated region
      $region9: #{tpu_custom_call.1} parent=5 // pred_check
        _
      $region10: #{tpu_custom_call.1} parent=5 // pred_check_branch
        %153 = sbr.rel (%p150) target = $region12
      $region11: #{tpu_custom_call.1} parent=5 // pred_region
        %s154 = ssub.s32 %s16, 1
      $region12: #{tpu_custom_call.1} parent=5 // pred_fallthru
        _
      %p155 = scmp.lt.s32.totalorder %s16, 2
      // Predicated region
      $region13: #{tpu_custom_call.1} parent=5 // pred_check
        %p156 = pneg %p155
      $region14: #{tpu_custom_call.1} parent=5 // pred_check_branch
        %158 = sbr.rel (%p156) target = $region16
      $region15: #{tpu_custom_call.1} parent=5 // pred_region
        // Predicated region
        $region17: #{tpu_custom_call.1} parent=15 // pred_check
          %p159 = pneg %p50
        $region18: #{tpu_custom_call.1} parent=15 // pred_check_branch
          %161 = sbr.rel (%p159) target = $region20
        $region19: #{tpu_custom_call.1} parent=15 // pred_region
          %s162 = sand.u32 %s40, 1
          %s163 = scalar_lea.sflag [#allocation3], %s162
          %s164 = sand.u32 %s40, 1
          %s165 = smul.addr %s164, 8
          %s166 = scalar_lea.vmem [#allocation2], %s165
          %s168 = ssub.s32 128, 128
          %169 = vsyncadd %s163, %s168
          %s170 = smul.addr %s24, 2
          %s171 = smul.addr %s23, 8
          %s172 = sadd.s32 %s170, %s171
          %s173 = smul.addr %s172, 16
          %s174 = scalar_lea.hbm %s0, %s173
          %s175 = sshll.u32 %s166, 4
          %s176 = int_to_ptr.vmem [resolvable:$true] %s175
          %181 = dma.hbm_to_vmem [thread:$0]  %s174, 128, %s176, %s163, 32, 32, 2
        $region20: #{tpu_custom_call.1} parent=15 // pred_fallthru
          _
        // Predicated region
        $region21: #{tpu_custom_call.1} parent=15 // pred_check
          %p182 = pneg %p78
        $region22: #{tpu_custom_call.1} parent=15 // pred_check_branch
          %184 = sbr.rel (%p182) target = $region24
        $region23: #{tpu_custom_call.1} parent=15 // pred_region
          %s185 = sand.u32 %s68, 1
          %s186 = scalar_lea.sflag [#allocation5], %s185
          %s187 = sand.u32 %s68, 1
          %s188 = smul.addr %s187, 2
          %s189 = scalar_lea.vmem [#allocation4], %s188
          %s191 = ssub.s32 32, 32
          %192 = vsyncadd %s186, %s191
          %s193 = smul.addr %s24, 2
          %s194 = smul.addr %s23, 2
          %s195 = sadd.s32 %s193, %s194
          %s196 = smul.addr %s195, 16
          %s197 = scalar_lea.hbm %s1, %s196
          %s199 = sshll.u32 %s189, 4
          %s200 = int_to_ptr.vmem [resolvable:$true] %s199
          %202 = dma.hbm_to_vmem [thread:$0]  %s197, 32, %s200, %s186
        $region24: #{tpu_custom_call.1} parent=15 // pred_fallthru
          _
      $region16: #{tpu_custom_call.1} parent=5 // pred_fallthru
        _
      %p203 = scmp.le.s32.totalorder 1, %s16
      %p204 = scmp.lt.s32.totalorder %s16, 3
      %p205 = pnand %p203, %p204
      %p206 = pneg %p205
      // Predicated region
      $region25: #{tpu_custom_call.1} parent=5 // pred_check
        _
      $region26: #{tpu_custom_call.1} parent=5 // pred_check_branch
        %208 = sbr.rel (%p205) target = $region28
      $region27: #{tpu_custom_call.1} parent=5 // pred_region
        %s209 = ssub.s32 %s16, 1
        %s210 = sand.u32 %s43, 1
        %s211 = scalar_lea.sflag [#allocation3], %s210
        %s212 = sand.u32 %s43, 1
        %s213 = smul.addr %s212, 8
        %s214 = scalar_lea.vmem [#allocation2], %s213
        // Predicated region
        $region29: #{tpu_custom_call.1} parent=27 // pred_check
          %p215 = pneg %p56
        $region30: #{tpu_custom_call.1} parent=27 // pred_check_branch
          %217 = sbr.rel (%p215) target = $region32
        $region31: #{tpu_custom_call.1} parent=27 // pred_region
          %218 = dma.done %s211, 128
        $region32: #{tpu_custom_call.1} parent=27 // pred_fallthru
          _
        %s219 = sand.u32 %s71, 1
        %s220 = scalar_lea.sflag [#allocation5], %s219
        %s221 = sand.u32 %s71, 1
        %s222 = smul.addr %s221, 2
        %s223 = scalar_lea.vmem [#allocation4], %s222
        // Predicated region
        $region33: #{tpu_custom_call.1} parent=27 // pred_check
          %p224 = pneg %p84
        $region34: #{tpu_custom_call.1} parent=27 // pred_check_branch
          %226 = sbr.rel (%p224) target = $region36
        $region35: #{tpu_custom_call.1} parent=27 // pred_region
          %227 = dma.done %s220, 32
        $region36: #{tpu_custom_call.1} parent=27 // pred_fallthru
          _
        %s228 = sand.u32 %s43, 1
        %s229 = scalar_lea.sflag [#allocation3], %s228
        %s230 = sand.u32 %s43, 1
        %s231 = smul.addr %s230, 8
        %s232 = scalar_lea.vmem [#allocation2], %s231
        %p233 = pneg %p56
        %p234 = pneg %p53
        %s235 = sand.u32 %s71, 1
        %s236 = scalar_lea.sflag [#allocation5], %s235
        %s237 = sand.u32 %s71, 1
        %s238 = smul.addr %s237, 2
        %s239 = scalar_lea.vmem [#allocation4], %s238
        %p240 = pneg %p84
        %p241 = pneg %p81
        %p242 = pneg %p112
        %p243 = pneg %p109
        %p244 = scmp.lt.s32.totalorder %s25, 1
        %s245 = scalar_select %p244, %s25, 1
        %p246 = scmp.lt.s32.totalorder %s26, 0
        %s247 = scalar_select %p246, %s26, 0
        %s248 = smul.addr %s245, 4
        %s249 = sadd.s32 %s247, %s248
        %s250 = scalar_lea.vmem %s2, %s249
        %p251 = pneg %p140
        %p252 = pneg %p137
        %p253 = scmp.lt.s32.totalorder %s25, 1
        %s254 = scalar_select %p253, %s25, 1
        %p255 = scmp.lt.s32.totalorder %s26, 0
        %s256 = scalar_select %p255, %s26, 0
        %s257 = smul.addr %s254, 4
        %s258 = sadd.s32 %s256, %s257
        %s259 = scalar_lea.vmem %s3, %s258
        %p260 = scmp.lt.s32.totalorder %s25, 1
        %s261 = scalar_select %p260, %s25, 1
        %p262 = scmp.lt.s32.totalorder %s26, 0
        %s263 = scalar_select %p262, %s26, 0
        %s264 = smul.addr %s261, 4
        %s265 = sadd.s32 %s263, %s264
        %s266 = scalar_lea.vmem %s2, %s265
        %p267 = scmp.lt.s32.totalorder %s25, 1
        %s268 = scalar_select %p267, %s25, 1
        %p269 = scmp.lt.s32.totalorder %s26, 0
        %s270 = scalar_select %p269, %s26, 0
        %s271 = smul.addr %s268, 4
        %s272 = sadd.s32 %s270, %s271
        %s273 = scalar_lea.vmem %s3, %s272
        %v274 = vld [vmem:[%s223] sm:$0x3]
        %v275 = vld [vmem:[%s214] sm:$0x3]
        %s276 = scalar_lea.vmem %s214, 2 [#allocation2]
        %v277 = vld [vmem:[%s276] sm:$0x3]
        %s278 = scalar_lea.vmem %s214, 4 [#allocation2]
        %v279 = vld [vmem:[%s278] sm:$0x3]
        %s280 = scalar_lea.vmem %s214, 6 [#allocation2]
        %v281 = vld [vmem:[%s280] sm:$0x3]
        %v282 = vmax.f32 %v275, %v277
        %v283 = vmax.f32 %v282, %v279
        %v284 = vmax.f32 %v283, %v281
        %v285 = vsub.f32 %v275, %v284
        %v286 = vmul.f32 %v285, 1.442695
        %v287 = vpow.pop %v286
        %v288 = vsub.f32 %v277, %v284
        %v289 = vmul.f32 %v288, 1.442695
        %v290 = vpow.pop %v289
        %v291 = vsub.f32 %v279, %v284
        %v292 = vmul.f32 %v291, 1.442695
        %v293 = vpow.pop %v292
        %v294 = vsub.f32 %v281, %v284
        %v295 = vmul.f32 %v294, 1.442695
        %v296 = vpow.pop %v295
        %v297 = vadd.f32 %v287, %v290
        %v298 = vadd.f32 %v297, %v293
        %v299 = vadd.f32 %v298, %v296
        %v300 = vrcp.pop %v299
        %v301 = vmul.f32 %v287, %v300
        %vm302 = vcmp.eq.s32.totalorder %v274, 0
        %v303 = vsel %vm302, 1, 0
        %v304 = vcvt.s32.f32 %v303
        %v305 = vmul.f32 %v301, %v304
        %v307 = vlaneseq
        %v308 = vshrl.u32 %v307, 7
        %v309 = vsub.s32 0, %v308
        %v310 = vrot.slane %v305, %v309
        %v311 = vlaneseq
        %v312 = vshrl.u32 %v311, 7
        %v313 = vsub.s32 1, %v312
        %v314 = vrot.slane %v305, %v313
        %vm317 = vcmask 1040384
        %v318 = vsel %vm317, %v310, 0.0
        %v319 = vsel %vm317, %v314, 0.0
        %v320 = vadd.f32 %v318, %v319
        %321 = vadd.xlane.f32.xlu0 %v320
        %v322 = vpop.xlane.xlu0 %321
        %vm323 = vcmask 0
        %324 = vst.msk [vmem:[%s266] sm:$0x1] %vm323, %v322
        %v326 = vlaneseq
        %v327 = vshrl.u32 %v326, 7
        %v328 = vsub.s32 0, %v327
        %v329 = vrot.slane %v301, %v328
        %v330 = vlaneseq
        %v331 = vshrl.u32 %v330, 7
        %v332 = vsub.s32 1, %v331
        %v333 = vrot.slane %v301, %v332
        %v336 = vsel %vm317, %v329, 0.0
        %v337 = vsel %vm317, %v333, 0.0
        %v338 = vadd.f32 %v336, %v337
        %339 = vadd.xlane.f32.xlu0 %v338
        %v340 = vpop.xlane.xlu0 %339
        %v342 = vlaneseq
        %v343 = vshrl.u32 %v342, 7
        %v344 = vsub.s32 0, %v343
        %v345 = vrot.slane %v304, %v344
        %v346 = vlaneseq
        %v347 = vshrl.u32 %v346, 7
        %v348 = vsub.s32 1, %v347
        %v349 = vrot.slane %v304, %v348
        %v352 = vsel %vm317, %v345, 0.0
        %v353 = vsel %vm317, %v349, 0.0
        %v354 = vadd.f32 %v352, %v353
        %355 = vadd.xlane.f32.xlu0 %v354
        %v356 = vpop.xlane.xlu0 %355
        %v357 = vadd.f32 %v340, %v356
        %358 = vst.msk [vmem:[%s273] sm:$0x1] %vm323, %v357
        %v359 = vmul.f32 %v290, %v300
        %vm360 = vcmp.eq.s32.totalorder %v274, 1
        %v361 = vsel %vm360, 1, 0
        %v362 = vcvt.s32.f32 %v361
        %v363 = vmul.f32 %v359, %v362
        %v365 = vlaneseq
        %v366 = vshrl.u32 %v365, 7
        %v367 = vsub.s32 0, %v366
        %v368 = vrot.slane %v363, %v367
        %v369 = vlaneseq
        %v370 = vshrl.u32 %v369, 7
        %v371 = vsub.s32 1, %v370
        %v372 = vrot.slane %v363, %v371
        %v375 = vsel %vm317, %v368, 0.0
        %v376 = vsel %vm317, %v372, 0.0
        %v377 = vadd.f32 %v375, %v376
        %378 = vadd.xlane.f32.xlu0 %v377
        %v379 = vpop.xlane.xlu0 %378
        %s380 = scalar_lea.vmem %s266, 1
        %381 = vst.msk [vmem:[%s380] sm:$0x1] %vm323, %v379
        %v383 = vlaneseq
        %v384 = vshrl.u32 %v383, 7
        %v385 = vsub.s32 0, %v384
        %v386 = vrot.slane %v359, %v385
        %v387 = vlaneseq
        %v388 = vshrl.u32 %v387, 7
        %v389 = vsub.s32 1, %v388
        %v390 = vrot.slane %v359, %v389
        %v393 = vsel %vm317, %v386, 0.0
        %v394 = vsel %vm317, %v390, 0.0
        %v395 = vadd.f32 %v393, %v394
        %396 = vadd.xlane.f32.xlu0 %v395
        %v397 = vpop.xlane.xlu0 %396
        %v399 = vlaneseq
        %v400 = vshrl.u32 %v399, 7
        %v401 = vsub.s32 0, %v400
        %v402 = vrot.slane %v362, %v401
        %v403 = vlaneseq
        %v404 = vshrl.u32 %v403, 7
        %v405 = vsub.s32 1, %v404
        %v406 = vrot.slane %v362, %v405
        %v409 = vsel %vm317, %v402, 0.0
        %v410 = vsel %vm317, %v406, 0.0
        %v411 = vadd.f32 %v409, %v410
        %412 = vadd.xlane.f32.xlu0 %v411
        %v413 = vpop.xlane.xlu0 %412
        %v414 = vadd.f32 %v397, %v413
        %s415 = scalar_lea.vmem %s273, 1
        %416 = vst.msk [vmem:[%s415] sm:$0x1] %vm323, %v414
        %v417 = vmul.f32 %v293, %v300
        %vm418 = vcmp.eq.s32.totalorder %v274, 2
        %v419 = vsel %vm418, 1, 0
        %v420 = vcvt.s32.f32 %v419
        %v421 = vmul.f32 %v417, %v420
        %v423 = vlaneseq
        %v424 = vshrl.u32 %v423, 7
        %v425 = vsub.s32 0, %v424
        %v426 = vrot.slane %v421, %v425
        %v427 = vlaneseq
        %v428 = vshrl.u32 %v427, 7
        %v429 = vsub.s32 1, %v428
        %v430 = vrot.slane %v421, %v429
        %v433 = vsel %vm317, %v426, 0.0
        %v434 = vsel %vm317, %v430, 0.0
        %v435 = vadd.f32 %v433, %v434
        %436 = vadd.xlane.f32.xlu0 %v435
        %v437 = vpop.xlane.xlu0 %436
        %s438 = scalar_lea.vmem %s266, 2
        %439 = vst.msk [vmem:[%s438] sm:$0x1] %vm323, %v437
        %v441 = vlaneseq
        %v442 = vshrl.u32 %v441, 7
        %v443 = vsub.s32 0, %v442
        %v444 = vrot.slane %v417, %v443
        %v445 = vlaneseq
        %v446 = vshrl.u32 %v445, 7
        %v447 = vsub.s32 1, %v446
        %v448 = vrot.slane %v417, %v447
        %v451 = vsel %vm317, %v444, 0.0
        %v452 = vsel %vm317, %v448, 0.0
        %v453 = vadd.f32 %v451, %v452
        %454 = vadd.xlane.f32.xlu0 %v453
        %v455 = vpop.xlane.xlu0 %454
        %v457 = vlaneseq
        %v458 = vshrl.u32 %v457, 7
        %v459 = vsub.s32 0, %v458
        %v460 = vrot.slane %v420, %v459
        %v461 = vlaneseq
        %v462 = vshrl.u32 %v461, 7
        %v463 = vsub.s32 1, %v462
        %v464 = vrot.slane %v420, %v463
        %v467 = vsel %vm317, %v460, 0.0
        %v468 = vsel %vm317, %v464, 0.0
        %v469 = vadd.f32 %v467, %v468
        %470 = vadd.xlane.f32.xlu0 %v469
        %v471 = vpop.xlane.xlu0 %470
        %v472 = vadd.f32 %v455, %v471
        %s473 = scalar_lea.vmem %s273, 2
        %474 = vst.msk [vmem:[%s473] sm:$0x1] %vm323, %v472
        %v475 = vmul.f32 %v296, %v300
        %vm476 = vcmp.eq.s32.totalorder %v274, 3
        %v477 = vsel %vm476, 1, 0
        %v478 = vcvt.s32.f32 %v477
        %v479 = vmul.f32 %v475, %v478
        %v481 = vlaneseq
        %v482 = vshrl.u32 %v481, 7
        %v483 = vsub.s32 0, %v482
        %v484 = vrot.slane %v479, %v483
        %v485 = vlaneseq
        %v486 = vshrl.u32 %v485, 7
        %v487 = vsub.s32 1, %v486
        %v488 = vrot.slane %v479, %v487
        %v491 = vsel %vm317, %v484, 0.0
        %v492 = vsel %vm317, %v488, 0.0
        %v493 = vadd.f32 %v491, %v492
        %494 = vadd.xlane.f32.xlu0 %v493
        %v495 = vpop.xlane.xlu0 %494
        %s496 = scalar_lea.vmem %s266, 3
        %497 = vst.msk [vmem:[%s496] sm:$0x1] %vm323, %v495
        %v499 = vlaneseq
        %v500 = vshrl.u32 %v499, 7
        %v501 = vsub.s32 0, %v500
        %v502 = vrot.slane %v475, %v501
        %v503 = vlaneseq
        %v504 = vshrl.u32 %v503, 7
        %v505 = vsub.s32 1, %v504
        %v506 = vrot.slane %v475, %v505
        %v509 = vsel %vm317, %v502, 0.0
        %v510 = vsel %vm317, %v506, 0.0
        %v511 = vadd.f32 %v509, %v510
        %512 = vadd.xlane.f32.xlu0 %v511
        %v513 = vpop.xlane.xlu0 %512
        %v515 = vlaneseq
        %v516 = vshrl.u32 %v515, 7
        %v517 = vsub.s32 0, %v516
        %v518 = vrot.slane %v478, %v517
        %v519 = vlaneseq
        %v520 = vshrl.u32 %v519, 7
        %v521 = vsub.s32 1, %v520
        %v522 = vrot.slane %v478, %v521
        %v525 = vsel %vm317, %v518, 0.0
        %v526 = vsel %vm317, %v522, 0.0
        %v527 = vadd.f32 %v525, %v526
        %528 = vadd.xlane.f32.xlu0 %v527
        %v529 = vpop.xlane.xlu0 %528
        %v530 = vadd.f32 %v513, %v529
        %s531 = scalar_lea.vmem %s273, 3
        %532 = vst.msk [vmem:[%s531] sm:$0x1] %vm323, %v530
        %p533 = scmp.lt.s32.totalorder %s25, 1
        %s534 = scalar_select %p533, %s25, 1
        %p535 = scmp.lt.s32.totalorder %s26, 0
        %s536 = scalar_select %p535, %s26, 0
        %s537 = smul.addr %s534, 4
        %s538 = sadd.s32 %s536, %s537
        %s539 = scalar_lea.vmem %s2, %s538
        %p540 = scmp.lt.s32.totalorder %s25, 1
        %s541 = scalar_select %p540, %s25, 1
        %p542 = scmp.lt.s32.totalorder %s26, 0
        %s543 = scalar_select %p542, %s26, 0
        %s544 = smul.addr %s541, 4
        %s545 = sadd.s32 %s543, %s544
        %s546 = scalar_lea.vmem %s3, %s545
        // Predicated region
        $region37: #{tpu_custom_call.1} parent=27 // pred_check
          %p547 = pneg %p109
        $region38: #{tpu_custom_call.1} parent=27 // pred_check_branch
          %549 = sbr.rel (%p547) target = $region40
        $region39: #{tpu_custom_call.1} parent=27 // pred_region
          _
        $region40: #{tpu_custom_call.1} parent=27 // pred_fallthru
          _
        // Predicated region
        $region41: #{tpu_custom_call.1} parent=27 // pred_check
          %p550 = pneg %p137
        $region42: #{tpu_custom_call.1} parent=27 // pred_check_branch
          %552 = sbr.rel (%p550) target = $region44
        $region43: #{tpu_custom_call.1} parent=27 // pred_region
          _
        $region44: #{tpu_custom_call.1} parent=27 // pred_fallthru
          _
      $region28: #{tpu_custom_call.1} parent=5 // pred_fallthru
        _
      %p553 = scmp.le.s32.totalorder 2, %s16
      // Predicated region
      $region45: #{tpu_custom_call.1} parent=5 // pred_check
        %p554 = pneg %p553
      $region46: #{tpu_custom_call.1} parent=5 // pred_check_branch
        %556 = sbr.rel (%p554) target = $region48
      $region47: #{tpu_custom_call.1} parent=5 // pred_region
        %s557 = ssub.s32 %s16, 2
        // Predicated region
        $region49: #{tpu_custom_call.1} parent=47 // pred_check
          %p558 = pneg %p115
        $region50: #{tpu_custom_call.1} parent=47 // pred_check_branch
          %560 = sbr.rel (%p558) target = $region52
        $region51: #{tpu_custom_call.1} parent=47 // pred_region
          %p561 = scmp.lt.s32.totalorder %s27, 1
          %s562 = scalar_select %p561, %s27, 1
          %p563 = scmp.lt.s32.totalorder %s28, 0
          %s564 = scalar_select %p563, %s28, 0
          %s565 = smul.addr %s562, 4
          %s566 = sadd.s32 %s564, %s565
          %s567 = scalar_lea.vmem %s2, %s566
        $region52: #{tpu_custom_call.1} parent=47 // pred_fallthru
          _
        // Predicated region
        $region53: #{tpu_custom_call.1} parent=47 // pred_check
          %p568 = pneg %p143
        $region54: #{tpu_custom_call.1} parent=47 // pred_check_branch
          %570 = sbr.rel (%p568) target = $region56
        $region55: #{tpu_custom_call.1} parent=47 // pred_region
          %p571 = scmp.lt.s32.totalorder %s27, 1
          %s572 = scalar_select %p571, %s27, 1
          %p573 = scmp.lt.s32.totalorder %s28, 0
          %s574 = scalar_select %p573, %s28, 0
          %s575 = smul.addr %s572, 4
          %s576 = sadd.s32 %s574, %s575
          %s577 = scalar_lea.vmem %s3, %s576
        $region56: #{tpu_custom_call.1} parent=47 // pred_fallthru
          _
      $region48: #{tpu_custom_call.1} parent=5 // pred_fallthru
        _
    $region6: #{tpu_custom_call.1} parent=1 // loop_footer
      %s20 = sadd.s32 1, %s16
    $region7: #{tpu_custom_call.1} parent=1 // loop_footer_branch
      %15 = sbr.rel target = $region3
    $region8: #{tpu_custom_call.1} parent=1 // loop_exit
      _
    %578 = vsyncpa [#allocation3], 1
    %s579 = scalar_lea.sflag [#allocation3], 1
    %580 = vsyncpa %s579, 1
    %581 = vsyncpa [#allocation5], 1
    %s582 = scalar_lea.sflag [#allocation5], 1
    %583 = vsyncpa %s582, 1

</llo_original>
